<compile_context>
chip_gen: v7x
topology: tpu7x:2x2x1
jax: 0.10.0
libtpu: 0.0.40
codegen_flags: <defaults>
</compile_context>

<pallas_src>
import functools

import jax
import jax.numpy as jnp
from jax import lax
from jax.experimental import pallas as pl
from jax.experimental.pallas import tpu as pltpu


def _im2col_slab(x, H, W, left_ok, right_ok):
    """Build the (9*C, H*W) bf16 im2col slab of 3x3 taps from x: (C, H*W) f32.

    Tap t = kh*3 + kw holds x[c, h+kh-1, w+kw-1] at flat position s = h*W + w
    (zero outside the image). Vertical out-of-range falls into the zero-padded
    flat row automatically; horizontal row-wrap is removed by left_ok/right_ok.
    """
    C, S = x.shape
    P = pl.cdiv(W + 1, 128) * 128                 # lane-aligned zero pad, >= W+1
    zpad = jnp.zeros((C, P), x.dtype)
    xpad = jnp.concatenate([zpad, x, zpad], axis=1)   # (C, P + S + P), aligned

    taps = []
    for dh in (-1, 0, 1):
        for dw in (-1, 0, 1):
            k = dh * W + dw
            t = x if k == 0 else xpad[:, P + k:P + k + S]   # static lane shift
            if dw == 1:
                t = jnp.where(right_ok, t, 0.0)
            elif dw == -1:
                t = jnp.where(left_ok, t, 0.0)
            taps.append(t)
    # rows ordered (kh*3 + kw)*C + c_in, matching the im2col weight layout
    return jnp.concatenate(taps, axis=0).astype(jnp.bfloat16)   # (9C, S)


def basic_block_kernel(x_ref,            # (C, H*W)   input dtype
                       w1_ref, w2_ref,   # (C, 9*C)   bf16 im2col weights
                       p_ref,            # (C, 8)     f32 [g1,b1,t1,eps1,g2,b2,t2,eps2]
                       out_ref,          # (C, H*W)   out dtype
                       *, H, W):
    C, S = x_ref.shape

    # Single load of x: conv1 operand AND the f32 residual identity.
    x = x_ref[...].astype(jnp.float32)                    # (C, S)

    # Horizontal-boundary masks (shared by both convs; computed once).
    col = lax.broadcasted_iota(jnp.int32, (1, S), 1)
    w_in_row = col % W
    left_ok = w_in_row >= 1                                # neighbour at w-1 exists
    right_ok = w_in_row <= W - 2                           # neighbour at w+1 exists

    def conv3x3(act_f32, w_ref):
        slab = _im2col_slab(act_f32, H, W, left_ok, right_ok)     # (9C, S) bf16
        return jnp.dot(w_ref[...], slab,
                       preferred_element_type=jnp.float32)        # (C, S) f32

    def frn(a, g, b, t, eps):
        nu2 = jnp.mean(a * a, axis=1, keepdims=True)              # (C, 1) lane reduce
        an = a * lax.rsqrt(nu2 + jnp.abs(eps))
        return jnp.maximum(g * an + b, t)

    p = p_ref[...]                                                # (C, 8) f32

    # conv1 -> FRN1 -> ReLU
    y = frn(conv3x3(x, w1_ref), p[:, 0:1], p[:, 1:2], p[:, 2:3], p[0:1, 3:4])
    y = jnp.maximum(y, 0.0)

    # conv2 -> FRN2 -> + f32 identity -> ReLU
    z = frn(conv3x3(y, w2_ref), p[:, 4:5], p[:, 5:6], p[:, 6:7], p[0:1, 7:8])
    out_ref[...] = jnp.maximum(z + x, 0.0).astype(out_ref.dtype)


def init_basic_block_params(key, planes):
    """Deterministic parameter init (shapes as in BasicBlock.__init__)."""
    k1, k2 = jax.random.split(key)
    fan_in = 9 * planes
    bound = 1.0 / (fan_in ** 0.5)
    # Conv2d-style weights in OIHW layout, uniform init.
    w1 = jax.random.uniform(k1, (planes, planes, 3, 3), jnp.float32, -bound, bound)
    w2 = jax.random.uniform(k2, (planes, planes, 3, 3), jnp.float32, -bound, bound)

    def frn_params():
        # FilterResponseNormalization.reset_parameters(): gamma=1, beta=0, tau=0
        return dict(gamma=jnp.ones((planes,), jnp.float32),
                    beta=jnp.zeros((planes,), jnp.float32),
                    tau=jnp.zeros((planes,), jnp.float32),
                    eps=jnp.full((1,), 1e-6, jnp.float32))

    return dict(w1=w1, w2=w2, frn1=frn_params(), frn2=frn_params())


def basic_block_forward(x_nchw, params):
    """x_nchw: (N, C, H, W), PyTorch convention. Returns the same shape/dtype.

    Best performance when H*W is a multiple of 128 and C a multiple of 8.
    """
    N, C, H, W = x_nchw.shape
    S = H * W

    # NCHW -> (N, C, H*W) is a contiguous reshape: no HBM transpose traffic.
    x = x_nchw.reshape(N, C, S)

    def im2col_weight(w_oihw):
        # (Cout, Cin, 3, 3) -> (Cout, 9*Cin); column index = (kh*3+kw)*Cin + cin
        return (jnp.transpose(w_oihw, (0, 2, 3, 1))
                .reshape(C, 9 * C).astype(jnp.bfloat16))

    w1 = im2col_weight(params["w1"])
    w2 = im2col_weight(params["w2"])

    def cols(p):
        return [p["gamma"], p["beta"], p["tau"],
                jnp.broadcast_to(p["eps"].reshape(()), (C,))]

    packed = jnp.stack(cols(params["frn1"]) + cols(params["frn2"]),
                       axis=1).astype(jnp.float32)                # (C, 8)

    kernel = functools.partial(basic_block_kernel, H=H, W=W)

    grid_spec = pltpu.PrefetchScalarGridSpec(
        num_scalar_prefetch=0,
        grid=(N,),
        in_specs=[
            pl.BlockSpec((None, C, S), lambda n: (n, 0, 0)),      # x (per image)
            pl.BlockSpec((C, 9 * C), lambda n: (0, 0)),           # w1 (constant)
            pl.BlockSpec((C, 9 * C), lambda n: (0, 0)),           # w2 (constant)
            pl.BlockSpec((C, 8), lambda n: (0, 0)),               # packed FRN params
        ],
        out_specs=pl.BlockSpec((None, C, S), lambda n: (n, 0, 0)),
    )

    # Output dtype matches the input dtype (run the surrounding model in bf16
    # to halve the writeback; here f32 preserves the PyTorch-exact residual).
    out = pl.pallas_call(
        kernel,
        out_shape=jax.ShapeDtypeStruct((N, C, S), x_nchw.dtype),
        grid_spec=grid_spec,
        compiler_params=pltpu.CompilerParams(
            dimension_semantics=("parallel",)),
    )(x, w1, w2, packed)

    return out.reshape(N, C, H, W)


# ------------- pure-JAX reference (precision-matched to the kernel) ----------
def basic_block_ref(x_nchw, params):
    """Reference in NCHW. Conv operands are bf16-rounded (as in the kernel);
    accumulation, FRN, the identity and the residual add are f32."""
    C = x_nchw.shape[1]
    bf = lambda a: a.astype(jnp.bfloat16).astype(jnp.float32)

    def conv(x, w_oihw):
        return lax.conv_general_dilated(
            bf(x), bf(w_oihw), window_strides=(1, 1), padding=((1, 1), (1, 1)),
            dimension_numbers=("NCHW", "OIHW", "NCHW"),
            precision=lax.Precision.HIGHEST)

    def frn(x, p):
        r = lambda v: v.reshape(1, C, 1, 1)
        nu2 = jnp.mean(x * x, axis=(2, 3), keepdims=True)
        xn = x * lax.rsqrt(nu2 + jnp.abs(p["eps"]))
        return jnp.maximum(r(p["gamma"]) * xn + r(p["beta"]), r(p["tau"]))

    out = jnp.maximum(frn(conv(x_nchw, params["w1"]), params["frn1"]), 0.0)
    out = frn(conv(out, params["w2"]), params["frn2"])
    return jnp.maximum(out + x_nchw, 0.0)   # f32 identity, as in the kernel


if __name__ == "__main__":
    key = jax.random.PRNGKey(0)
    kx, kp = jax.random.split(key)

    # stride=1, downsample=None  =>  in_planes == planes
    N, C, H, W = 2, 8, 16, 16      # H*W = 256 (lane-dense), C = 8 (sublane-aligned)
    x = jax.random.normal(kx, (N, C, H, W), jnp.float32)
    params = init_basic_block_params(kp, C)

    out = jax.block_until_ready(basic_block_forward(x, params))
    ref = jax.block_until_ready(basic_block_ref(x, params))

    assert out.shape == (N, C, H, W), out.shape
    max_err = float(jnp.max(jnp.abs(out - ref)))
    if max_err > 5e-3:
        raise AssertionError(f"mismatch vs reference: max abs err {max_err}")
    print("KERNEL_OK")
</pallas_src>

<mosaic_0001>
module attributes {stable_mosaic.version = 11 : i64} {
  func.func @basic_block_kernel(%arg0: i32, %arg1: memref<1x8x256xf32, #tpu.memory_space<vmem>>, %arg2: memref<8x72xbf16, #tpu.memory_space<vmem>>, %arg3: memref<8x72xbf16, #tpu.memory_space<vmem>>, %arg4: memref<8x8xf32, #tpu.memory_space<vmem>>, %arg5: memref<1x8x256xf32, #tpu.memory_space<vmem>>) attributes {dimension_semantics = [#tpu.dimension_semantics<parallel>], iteration_bounds = array<i64: 2>, scalar_prefetch = 0 : i64, scratch_operands = 0 : i64, tpu.core_type = #tpu.core_type<tc>, window_params = [{transform_indices = @transform_0, window_bounds = array<i64: 1, 8, 256>}, {pipeline_mode = #tpu.pipeline_mode<synchronous>, transform_indices = @transform_1, window_bounds = array<i64: 8, 72>}, {pipeline_mode = #tpu.pipeline_mode<synchronous>, transform_indices = @transform_2, window_bounds = array<i64: 8, 72>}, {pipeline_mode = #tpu.pipeline_mode<synchronous>, transform_indices = @transform_3, window_bounds = array<i64: 8, 8>}, {transform_indices = @transform_4, window_bounds = array<i64: 1, 8, 256>}]} {
    %c0 = arith.constant 0 : index
    %c0_0 = arith.constant 0 : index
    %c0_1 = arith.constant 0 : index
    %0 = vector.load %arg1[%c0, %c0_0, %c0_1] : memref<1x8x256xf32, #tpu.memory_space<vmem>>, vector<1x8x256xf32>
    %1 = vector.shape_cast %0 : vector<1x8x256xf32> to vector<8x256xf32>
    %2 = tpu.iota {dimensions = array<i32: 1>} : vector<1x256xi32>
    %c16_i32 = arith.constant 16 : i32
    %c0_i32 = arith.constant 0 : i32
    %3 = arith.cmpi eq, %c16_i32, %c0_i32 : i32
    %c1_i32 = arith.constant 1 : i32
    %4 = arith.select %3, %c1_i32, %c16_i32 : i32
    %5 = vector.broadcast %4 : i32 to vector<1x256xi32>
    %6 = arith.remsi %2, %5 : vector<1x256xi32>
    %c0_i32_2 = arith.constant 0 : i32
    %7 = vector.broadcast %c0_i32_2 : i32 to vector<1x256xi32>
    %8 = arith.cmpi ne, %6, %7 : vector<1x256xi32>
    %c0_i32_3 = arith.constant 0 : i32
    %9 = vector.broadcast %c0_i32_3 : i32 to vector<1x256xi32>
    %10 = arith.cmpi slt, %6, %9 : vector<1x256xi32>
    %c0_i32_4 = arith.constant 0 : i32
    %11 = arith.cmpi slt, %4, %c0_i32_4 : i32
    %12 = vector.broadcast %11 : i1 to vector<1x256xi1>
    %13 = vector.broadcast %12 : vector<1x256xi1> to vector<1x256xi1>
    %14 = arith.xori %10, %13 : vector<1x256xi1>
    %15 = arith.andi %14, %8 : vector<1x256xi1>
    %16 = vector.broadcast %4 : i32 to vector<1x256xi32>
    %17 = arith.addi %6, %16 : vector<1x256xi32>
    %18 = arith.select %15, %17, %6 : vector<1x256xi1>, vector<1x256xi32>
    %c1_i32_5 = arith.constant 1 : i32
    %19 = vector.broadcast %c1_i32_5 : i32 to vector<1x256xi32>
    %20 = arith.cmpi sge, %18, %19 : vector<1x256xi32>
    %c14_i32 = arith.constant 14 : i32
    %21 = vector.broadcast %c14_i32 : i32 to vector<1x256xi32>
    %22 = arith.cmpi sle, %18, %21 : vector<1x256xi32>
    %c0_6 = arith.constant 0 : index
    %c0_7 = arith.constant 0 : index
    %23 = vector.load %arg4[%c0_6, %c0_7] : memref<8x8xf32, #tpu.memory_space<vmem>>, vector<8x8xf32>
    %cst = arith.constant 0.000000e+00 : f32
    %24 = vector.broadcast %cst : f32 to vector<8x128xf32>
    %25 = tpu.concatenate %24, %1, %24 in 1 : vector<8x128xf32>, vector<8x256xf32>, vector<8x128xf32> -> vector<8x512xf32>
    %26 = vector.extract_strided_slice %25 {offsets = [0, 111], sizes = [8, 256], strides = [1, 1]} : vector<8x512xf32> to vector<8x256xf32>
    %cst_8 = arith.constant 0.000000e+00 : f32
    %27 = vector.shape_cast %20 : vector<1x256xi1> to vector<1x256xi1>
    %28 = vector.broadcast %27 : vector<1x256xi1> to vector<8x256xi1>
    %29 = vector.broadcast %cst_8 : f32 to vector<8x256xf32>
    %30 = arith.select %28, %26, %29 : vector<8x256xi1>, vector<8x256xf32>
    %31 = vector.extract_strided_slice %25 {offsets = [0, 112], sizes = [8, 256], strides = [1, 1]} : vector<8x512xf32> to vector<8x256xf32>
    %32 = vector.extract_strided_slice %25 {offsets = [0, 113], sizes = [8, 256], strides = [1, 1]} : vector<8x512xf32> to vector<8x256xf32>
    %cst_9 = arith.constant 0.000000e+00 : f32
    %33 = vector.shape_cast %22 : vector<1x256xi1> to vector<1x256xi1>
    %34 = vector.broadcast %33 : vector<1x256xi1> to vector<8x256xi1>
    %35 = vector.broadcast %cst_9 : f32 to vector<8x256xf32>
    %36 = arith.select %34, %32, %35 : vector<8x256xi1>, vector<8x256xf32>
    %37 = vector.extract_strided_slice %25 {offsets = [0, 127], sizes = [8, 256], strides = [1, 1]} : vector<8x512xf32> to vector<8x256xf32>
    %cst_10 = arith.constant 0.000000e+00 : f32
    %38 = vector.shape_cast %20 : vector<1x256xi1> to vector<1x256xi1>
    %39 = vector.broadcast %38 : vector<1x256xi1> to vector<8x256xi1>
    %40 = vector.broadcast %cst_10 : f32 to vector<8x256xf32>
    %41 = arith.select %39, %37, %40 : vector<8x256xi1>, vector<8x256xf32>
    %42 = vector.extract_strided_slice %25 {offsets = [0, 129], sizes = [8, 256], strides = [1, 1]} : vector<8x512xf32> to vector<8x256xf32>
    %cst_11 = arith.constant 0.000000e+00 : f32
    %43 = vector.shape_cast %22 : vector<1x256xi1> to vector<1x256xi1>
    %44 = vector.broadcast %43 : vector<1x256xi1> to vector<8x256xi1>
    %45 = vector.broadcast %cst_11 : f32 to vector<8x256xf32>
    %46 = arith.select %44, %42, %45 : vector<8x256xi1>, vector<8x256xf32>
    %47 = vector.extract_strided_slice %25 {offsets = [0, 143], sizes = [8, 256], strides = [1, 1]} : vector<8x512xf32> to vector<8x256xf32>
    %cst_12 = arith.constant 0.000000e+00 : f32
    %48 = vector.shape_cast %20 : vector<1x256xi1> to vector<1x256xi1>
    %49 = vector.broadcast %48 : vector<1x256xi1> to vector<8x256xi1>
    %50 = vector.broadcast %cst_12 : f32 to vector<8x256xf32>
    %51 = arith.select %49, %47, %50 : vector<8x256xi1>, vector<8x256xf32>
    %52 = vector.extract_strided_slice %25 {offsets = [0, 144], sizes = [8, 256], strides = [1, 1]} : vector<8x512xf32> to vector<8x256xf32>
    %53 = vector.extract_strided_slice %25 {offsets = [0, 145], sizes = [8, 256], strides = [1, 1]} : vector<8x512xf32> to vector<8x256xf32>
    %cst_13 = arith.constant 0.000000e+00 : f32
    %54 = vector.shape_cast %22 : vector<1x256xi1> to vector<1x256xi1>
    %55 = vector.broadcast %54 : vector<1x256xi1> to vector<8x256xi1>
    %56 = vector.broadcast %cst_13 : f32 to vector<8x256xf32>
    %57 = arith.select %55, %53, %56 : vector<8x256xi1>, vector<8x256xf32>
    %58 = tpu.concatenate %30, %31, %36, %41, %1, %46, %51, %52, %57 in 0 : vector<8x256xf32>, vector<8x256xf32>, vector<8x256xf32>, vector<8x256xf32>, vector<8x256xf32>, vector<8x256xf32>, vector<8x256xf32>, vector<8x256xf32>, vector<8x256xf32> -> vector<72x256xf32>
    %59 = arith.truncf %58 : vector<72x256xf32> to vector<72x256xbf16>
    %c0_14 = arith.constant 0 : index
    %c0_15 = arith.constant 0 : index
    %60 = vector.load %arg2[%c0_14, %c0_15] : memref<8x72xbf16, #tpu.memory_space<vmem>>, vector<8x72xbf16>
    %cst_16 = arith.constant dense<0.000000e+00> : vector<8x256xf32>
    %61 = tpu.matmul %60, %59, %cst_16 {dimension_numbers = #tpu.dot_dimension_numbers<[1], [0], [0], [1], [0, 0, 1, 1], [], []>} : vector<8x72xbf16>, vector<72x256xbf16>, vector<8x256xf32> -> vector<8x256xf32>
    %62 = vector.extract_strided_slice %23 {offsets = [0, 0], sizes = [8, 1], strides = [1, 1]} : vector<8x8xf32> to vector<8x1xf32>
    %63 = vector.extract_strided_slice %23 {offsets = [0, 1], sizes = [8, 1], strides = [1, 1]} : vector<8x8xf32> to vector<8x1xf32>
    %64 = vector.extract_strided_slice %23 {offsets = [0, 2], sizes = [8, 1], strides = [1, 1]} : vector<8x8xf32> to vector<8x1xf32>
    %65 = vector.extract_strided_slice %23 {offsets = [0, 3], sizes = [1, 1], strides = [1, 1]} : vector<8x8xf32> to vector<1x1xf32>
    %66 = arith.mulf %61, %61 : vector<8x256xf32>
    %cst_17 = arith.constant dense<0.000000e+00> : vector<8xf32>
    %67 = vector.multi_reduction <add>, %66, %cst_17 [1] : vector<8x256xf32> to vector<8xf32>
    %68 = vector.shape_cast %67 : vector<8xf32> to vector<8x1xf32>
    %cst_18 = arith.constant 2.560000e+02 : f32
    %69 = vector.broadcast %cst_18 : f32 to vector<8x1xf32>
    %70 = arith.divf %68, %69 : vector<8x1xf32>
    %71 = math.absf %65 : vector<1x1xf32>
    %72 = vector.broadcast %71 : vector<1x1xf32> to vector<8x1xf32>
    %73 = arith.addf %70, %72 : vector<8x1xf32>
    %74 = math.rsqrt %73 : vector<8x1xf32>
    %75 = vector.broadcast %74 : vector<8x1xf32> to vector<8x256xf32>
    %76 = arith.mulf %61, %75 : vector<8x256xf32>
    %77 = vector.broadcast %62 : vector<8x1xf32> to vector<8x256xf32>
    %78 = arith.mulf %77, %76 : vector<8x256xf32>
    %79 = vector.broadcast %63 : vector<8x1xf32> to vector<8x256xf32>
    %80 = arith.addf %78, %79 : vector<8x256xf32>
    %81 = vector.broadcast %64 : vector<8x1xf32> to vector<8x256xf32>
    %82 = arith.maximumf %80, %81 : vector<8x256xf32>
    %cst_19 = arith.constant 0.000000e+00 : f32
    %83 = vector.broadcast %cst_19 : f32 to vector<8x256xf32>
    %84 = arith.maximumf %82, %83 : vector<8x256xf32>
    %cst_20 = arith.constant 0.000000e+00 : f32
    %85 = vector.broadcast %cst_20 : f32 to vector<8x128xf32>
    %86 = tpu.concatenate %85, %84, %85 in 1 : vector<8x128xf32>, vector<8x256xf32>, vector<8x128xf32> -> vector<8x512xf32>
    %87 = vector.extract_strided_slice %86 {offsets = [0, 111], sizes = [8, 256], strides = [1, 1]} : vector<8x512xf32> to vector<8x256xf32>
    %cst_21 = arith.constant 0.000000e+00 : f32
    %88 = vector.shape_cast %20 : vector<1x256xi1> to vector<1x256xi1>
    %89 = vector.broadcast %88 : vector<1x256xi1> to vector<8x256xi1>
    %90 = vector.broadcast %cst_21 : f32 to vector<8x256xf32>
    %91 = arith.select %89, %87, %90 : vector<8x256xi1>, vector<8x256xf32>
    %92 = vector.extract_strided_slice %86 {offsets = [0, 112], sizes = [8, 256], strides = [1, 1]} : vector<8x512xf32> to vector<8x256xf32>
    %93 = vector.extract_strided_slice %86 {offsets = [0, 113], sizes = [8, 256], strides = [1, 1]} : vector<8x512xf32> to vector<8x256xf32>
    %cst_22 = arith.constant 0.000000e+00 : f32
    %94 = vector.shape_cast %22 : vector<1x256xi1> to vector<1x256xi1>
    %95 = vector.broadcast %94 : vector<1x256xi1> to vector<8x256xi1>
    %96 = vector.broadcast %cst_22 : f32 to vector<8x256xf32>
    %97 = arith.select %95, %93, %96 : vector<8x256xi1>, vector<8x256xf32>
    %98 = vector.extract_strided_slice %86 {offsets = [0, 127], sizes = [8, 256], strides = [1, 1]} : vector<8x512xf32> to vector<8x256xf32>
    %cst_23 = arith.constant 0.000000e+00 : f32
    %99 = vector.shape_cast %20 : vector<1x256xi1> to vector<1x256xi1>
    %100 = vector.broadcast %99 : vector<1x256xi1> to vector<8x256xi1>
    %101 = vector.broadcast %cst_23 : f32 to vector<8x256xf32>
    %102 = arith.select %100, %98, %101 : vector<8x256xi1>, vector<8x256xf32>
    %103 = vector.extract_strided_slice %86 {offsets = [0, 129], sizes = [8, 256], strides = [1, 1]} : vector<8x512xf32> to vector<8x256xf32>
    %cst_24 = arith.constant 0.000000e+00 : f32
    %104 = vector.shape_cast %22 : vector<1x256xi1> to vector<1x256xi1>
    %105 = vector.broadcast %104 : vector<1x256xi1> to vector<8x256xi1>
    %106 = vector.broadcast %cst_24 : f32 to vector<8x256xf32>
    %107 = arith.select %105, %103, %106 : vector<8x256xi1>, vector<8x256xf32>
    %108 = vector.extract_strided_slice %86 {offsets = [0, 143], sizes = [8, 256], strides = [1, 1]} : vector<8x512xf32> to vector<8x256xf32>
    %cst_25 = arith.constant 0.000000e+00 : f32
    %109 = vector.shape_cast %20 : vector<1x256xi1> to vector<1x256xi1>
    %110 = vector.broadcast %109 : vector<1x256xi1> to vector<8x256xi1>
    %111 = vector.broadcast %cst_25 : f32 to vector<8x256xf32>
    %112 = arith.select %110, %108, %111 : vector<8x256xi1>, vector<8x256xf32>
    %113 = vector.extract_strided_slice %86 {offsets = [0, 144], sizes = [8, 256], strides = [1, 1]} : vector<8x512xf32> to vector<8x256xf32>
    %114 = vector.extract_strided_slice %86 {offsets = [0, 145], sizes = [8, 256], strides = [1, 1]} : vector<8x512xf32> to vector<8x256xf32>
    %cst_26 = arith.constant 0.000000e+00 : f32
    %115 = vector.shape_cast %22 : vector<1x256xi1> to vector<1x256xi1>
    %116 = vector.broadcast %115 : vector<1x256xi1> to vector<8x256xi1>
    %117 = vector.broadcast %cst_26 : f32 to vector<8x256xf32>
    %118 = arith.select %116, %114, %117 : vector<8x256xi1>, vector<8x256xf32>
    %119 = tpu.concatenate %91, %92, %97, %102, %84, %107, %112, %113, %118 in 0 : vector<8x256xf32>, vector<8x256xf32>, vector<8x256xf32>, vector<8x256xf32>, vector<8x256xf32>, vector<8x256xf32>, vector<8x256xf32>, vector<8x256xf32>, vector<8x256xf32> -> vector<72x256xf32>
    %120 = arith.truncf %119 : vector<72x256xf32> to vector<72x256xbf16>
    %c0_27 = arith.constant 0 : index
    %c0_28 = arith.constant 0 : index
    %121 = vector.load %arg3[%c0_27, %c0_28] : memref<8x72xbf16, #tpu.memory_space<vmem>>, vector<8x72xbf16>
    %cst_29 = arith.constant dense<0.000000e+00> : vector<8x256xf32>
    %122 = tpu.matmul %121, %120, %cst_29 {dimension_numbers = #tpu.dot_dimension_numbers<[1], [0], [0], [1], [0, 0, 1, 1], [], []>} : vector<8x72xbf16>, vector<72x256xbf16>, vector<8x256xf32> -> vector<8x256xf32>
    %123 = vector.extract_strided_slice %23 {offsets = [0, 4], sizes = [8, 1], strides = [1, 1]} : vector<8x8xf32> to vector<8x1xf32>
    %124 = vector.extract_strided_slice %23 {offsets = [0, 5], sizes = [8, 1], strides = [1, 1]} : vector<8x8xf32> to vector<8x1xf32>
    %125 = vector.extract_strided_slice %23 {offsets = [0, 6], sizes = [8, 1], strides = [1, 1]} : vector<8x8xf32> to vector<8x1xf32>
    %126 = vector.extract_strided_slice %23 {offsets = [0, 7], sizes = [1, 1], strides = [1, 1]} : vector<8x8xf32> to vector<1x1xf32>
    %127 = arith.mulf %122, %122 : vector<8x256xf32>
    %cst_30 = arith.constant dense<0.000000e+00> : vector<8xf32>
    %128 = vector.multi_reduction <add>, %127, %cst_30 [1] : vector<8x256xf32> to vector<8xf32>
    %129 = vector.shape_cast %128 : vector<8xf32> to vector<8x1xf32>
    %cst_31 = arith.constant 2.560000e+02 : f32
    %130 = vector.broadcast %cst_31 : f32 to vector<8x1xf32>
    %131 = arith.divf %129, %130 : vector<8x1xf32>
    %132 = math.absf %126 : vector<1x1xf32>
    %133 = vector.broadcast %132 : vector<1x1xf32> to vector<8x1xf32>
    %134 = arith.addf %131, %133 : vector<8x1xf32>
    %135 = math.rsqrt %134 : vector<8x1xf32>
    %136 = vector.broadcast %135 : vector<8x1xf32> to vector<8x256xf32>
    %137 = arith.mulf %122, %136 : vector<8x256xf32>
    %138 = vector.broadcast %123 : vector<8x1xf32> to vector<8x256xf32>
    %139 = arith.mulf %138, %137 : vector<8x256xf32>
    %140 = vector.broadcast %124 : vector<8x1xf32> to vector<8x256xf32>
    %141 = arith.addf %139, %140 : vector<8x256xf32>
    %142 = vector.broadcast %125 : vector<8x1xf32> to vector<8x256xf32>
    %143 = arith.maximumf %141, %142 : vector<8x256xf32>
    %144 = arith.addf %143, %1 : vector<8x256xf32>
    %cst_32 = arith.constant 0.000000e+00 : f32
    %145 = vector.broadcast %cst_32 : f32 to vector<8x256xf32>
    %146 = arith.maximumf %144, %145 : vector<8x256xf32>
    %c0_33 = arith.constant 0 : index
    %c0_34 = arith.constant 0 : index
    %c0_35 = arith.constant 0 : index
    %147 = vector.load %arg5[%c0_33, %c0_34, %c0_35] : memref<1x8x256xf32, #tpu.memory_space<vmem>>, vector<1x8x256xf32>
    %148 = vector.shape_cast %147 : vector<1x8x256xf32> to vector<8x256xf32>
    %149 = vector.shape_cast %146 : vector<8x256xf32> to vector<1x8x256xf32>
    tpu.vector_store %arg5[%c0_33, %c0_34, %c0_35], %149 {strides = array<i32>} : memref<1x8x256xf32, #tpu.memory_space<vmem>>, vector<1x8x256xf32>,
    return
  }
  func.func @transform_0(%arg0: i32) -> (i32, i32, i32) {
    %c0_i32 = arith.constant 0 : i32
    %c0_i32_0 = arith.constant 0 : i32
    %c0_i32_1 = arith.constant 0 : i32
    return %arg0, %c0_i32, %c0_i32_0 : i32, i32, i32
  }
  func.func @transform_1(%arg0: i32) -> (i32, i32) {
    %c0_i32 = arith.constant 0 : i32
    %c0_i32_0 = arith.constant 0 : i32
    %c0_i32_1 = arith.constant 0 : i32
    return %c0_i32, %c0_i32_0 : i32, i32
  }
  func.func @transform_2(%arg0: i32) -> (i32, i32) {
    %c0_i32 = arith.constant 0 : i32
    %c0_i32_0 = arith.constant 0 : i32
    %c0_i32_1 = arith.constant 0 : i32
    return %c0_i32, %c0_i32_0 : i32, i32
  }
  func.func @transform_3(%arg0: i32) -> (i32, i32) {
    %c0_i32 = arith.constant 0 : i32
    %c0_i32_0 = arith.constant 0 : i32
    %c0_i32_1 = arith.constant 0 : i32
    return %c0_i32, %c0_i32_0 : i32, i32
  }
  func.func @transform_4(%arg0: i32) -> (i32, i32, i32) {
    %c0_i32 = arith.constant 0 : i32
    %c0_i32_0 = arith.constant 0 : i32
    %c0_i32_1 = arith.constant 0 : i32
    return %arg0, %c0_i32, %c0_i32_0 : i32, i32, i32
  }
}

</mosaic_0001>

<llo_original>
// kernel: tpu_custom_call.1
$region0: #{tpu_custom_call.1}
  #allocation0 [shape = 'u32[]', space=smem, size = 0x4, offset = 0x4, fixed_abs, tag = 'smem constant byte address 0x4 - core index']
  #allocation1 [shape = 'u32[144,128]{1,0:T(1,128)}', space=vmem, size = 0x12000, scoped, tag = 'internal scratch']
  %s0 = inlined_call_operand.hbm [shape: f32[2,8,256], index: 0, kind: input, shape index: {}]
  %s1 = inlined_call_operand.hbm [shape: bf16[8,72], index: 1, kind: input, shape index: {}]
  %s2 = inlined_call_operand.hbm [shape: bf16[8,72], index: 2, kind: input, shape index: {}]
  %s3 = inlined_call_operand.vmem [shape: f32[8,8], index: 3, kind: input, shape index: {}]
  %s4 = inlined_call_operand.hbm [shape: f32[2,8,256], index: 4, kind: output, shape index: {}]
  %s5 = sld [smem:[#allocation0]]
  $region61: #{tpu_custom_call.1} parent=0
    _
  %s7 = ssub.s32 1, %s5
  %s8 = scalar_select 0, %s7, %s5
  $region1: #{tpu_custom_call.1} parent=0
    #allocation2 [shape = 'u8[16384]{0}', space=vmem, size = 0x4000, scoped, tag = 'input window, operand 0']
    #allocation3 [shape = 's32[2]{0}', space=sflag, size = 0x8, scoped, tag = 'scoped memory for tpu_custom_call.1']
    #allocation4 [shape = 's32[2]{0}', space=sflag, size = 0x8, scoped, tag = 'scoped memory for tpu_custom_call.1']
    #allocation5 [shape = 'u8[2048]{0}', space=vmem, size = 0x800, scoped, tag = 'input window, operand 1, single buffered']
    #allocation6 [shape = 's32[1]{0}', space=sflag, size = 0x4, scoped, tag = 'scoped memory for tpu_custom_call.1']
    #allocation7 [shape = 'u8[2048]{0}', space=vmem, size = 0x800, scoped, tag = 'input window, operand 2, single buffered']
    #allocation8 [shape = 'u8[16384]{0}', space=vmem, size = 0x4000, scoped, tag = 'output window, operand 0']
    %9 = vsyncpa [#allocation3], 0
    %s10 = scalar_lea.sflag [#allocation3], 1
    %11 = vsyncpa %s10, 0
    %12 = vsyncpa [#allocation6], 0
    %13 = vsyncpa [#allocation4], 0
    %s14 = scalar_lea.sflag [#allocation4], 1
    %15 = vsyncpa %s14, 0
    loop: start=0, step=1, limit=4
    $region2: #{tpu_custom_call.1} parent=1 // loop_pre_header
      _
    $region3: #{tpu_custom_call.1} parent=1 // loop_header
      %s17 = sphi 0, %s21
      %p18 = scmp.ge.s32.totalorder %s17, 4
      %s27 = sphi 0, %s29
      %s30 = sphi 0, %s27
      %s31 = sphi 0, %s30
      %s47 = sphi 0, %s31
      %s51 = sphi 0, %s51
      %s53 = sphi 0, %s51
      %s54 = sphi 0, %s53
      %s68 = sphi 0, %s54
      %s72 = sphi 0, %s72
      %s74 = sphi 0, %s72
      %s75 = sphi 0, %s74
      %s89 = sphi 0, %s75
      %s93 = sphi 0, %s93
      %s95 = sphi 0, %s93
      %s96 = sphi 0, %s95
      %s110 = sphi 0, %s96
      %s116 = sphi 0, %s118
      %s119 = sphi 0, %s116
      %s120 = sphi 0, %s119
      %s136 = sphi 0, %s120
    $region4: #{tpu_custom_call.1} parent=1 // loop_header_branch
      %20 = sbr.rel (%p18) target = $region8
    $region5: #{tpu_custom_call.1} parent=1 // loop_body
      %s22 = ssub.s32 %s17, 1
      %s23 = ssub.s32 %s17, 2
      %s24 = sadd.s32 %s17, 1
      %s25 = ssub.s32 %s17, %s24
      %p26 = scmp.eq.s32.totalorder %s25, 0
      %s28 = sadd.s32 %s27, 1
      %s29 = scalar_select %p26, %s27, %s28
      %p32 = pneg %p26
      %p33 = scmp.eq.s32.totalorder %s17, 1
      %p34 = por %p32, %p33
      %p35 = scmp.ne.s32.totalorder %s27, %s30
      %p36 = scmp.eq.s32.totalorder %s17, 0
      %p37 = por %p35, %p36
      %p38 = scmp.ne.s32.totalorder %s27, %s30
      %p39 = scmp.eq.s32.totalorder %s22, 1
      %p40 = por %p38, %p39
      %p41 = scmp.ne.s32.totalorder %s30, %s31
      %p42 = scmp.eq.s32.totalorder %s22, 0
      %p43 = por %p41, %p42
      %p44 = scmp.ne.s32.totalorder %s30, %s31
      %p45 = scmp.eq.s32.totalorder %s23, 1
      %p46 = por %p44, %p45
      %p48 = scmp.ne.s32.totalorder %s31, %s47
      %p49 = scmp.eq.s32.totalorder %s23, 0
      %p50 = por %p48, %p49
      %s52 = sadd.s32 %s51, 1
      %p55 = scmp.eq.s32.totalorder %s17, 1
      %p56 = scmp.ne.s32.totalorder %s51, %s53
      %p57 = scmp.eq.s32.totalorder %s17, 0
      %p58 = por %p56, %p57
      %p59 = scmp.ne.s32.totalorder %s51, %s53
      %p60 = scmp.eq.s32.totalorder %s22, 1
      %p61 = por %p59, %p60
      %p62 = scmp.ne.s32.totalorder %s53, %s54
      %p63 = scmp.eq.s32.totalorder %s22, 0
      %p64 = por %p62, %p63
      %p65 = scmp.ne.s32.totalorder %s53, %s54
      %p66 = scmp.eq.s32.totalorder %s23, 1
      %p67 = por %p65, %p66
      %p69 = scmp.ne.s32.totalorder %s54, %s68
      %p70 = scmp.eq.s32.totalorder %s23, 0
      %p71 = por %p69, %p70
      %s73 = sadd.s32 %s72, 1
      %p76 = scmp.eq.s32.totalorder %s17, 1
      %p77 = scmp.ne.s32.totalorder %s72, %s74
      %p78 = scmp.eq.s32.totalorder %s17, 0
      %p79 = por %p77, %p78
      %p80 = scmp.ne.s32.totalorder %s72, %s74
      %p81 = scmp.eq.s32.totalorder %s22, 1
      %p82 = por %p80, %p81
      %p83 = scmp.ne.s32.totalorder %s74, %s75
      %p84 = scmp.eq.s32.totalorder %s22, 0
      %p85 = por %p83, %p84
      %p86 = scmp.ne.s32.totalorder %s74, %s75
      %p87 = scmp.eq.s32.totalorder %s23, 1
      %p88 = por %p86, %p87
      %p90 = scmp.ne.s32.totalorder %s75, %s89
      %p91 = scmp.eq.s32.totalorder %s23, 0
      %p92 = por %p90, %p91
      %s94 = sadd.s32 %s93, 1
      %p97 = scmp.eq.s32.totalorder %s17, 1
      %p98 = scmp.ne.s32.totalorder %s93, %s95
      %p99 = scmp.eq.s32.totalorder %s17, 0
      %p100 = por %p98, %p99
      %p101 = scmp.ne.s32.totalorder %s93, %s95
      %p102 = scmp.eq.s32.totalorder %s22, 1
      %p103 = por %p101, %p102
      %p104 = scmp.ne.s32.totalorder %s95, %s96
      %p105 = scmp.eq.s32.totalorder %s22, 0
      %p106 = por %p104, %p105
      %p107 = scmp.ne.s32.totalorder %s95, %s96
      %p108 = scmp.eq.s32.totalorder %s23, 1
      %p109 = por %p107, %p108
      %p111 = scmp.ne.s32.totalorder %s96, %s110
      %p112 = scmp.eq.s32.totalorder %s23, 0
      %p113 = por %p111, %p112
      %s114 = ssub.s32 %s17, %s24
      %p115 = scmp.eq.s32.totalorder %s114, 0
      %s117 = sadd.s32 %s116, 1
      %s118 = scalar_select %p115, %s116, %s117
      %p121 = pneg %p115
      %p122 = scmp.eq.s32.totalorder %s17, 1
      %p123 = por %p121, %p122
      %p124 = scmp.ne.s32.totalorder %s116, %s119
      %p125 = scmp.eq.s32.totalorder %s17, 0
      %p126 = por %p124, %p125
      %p127 = scmp.ne.s32.totalorder %s116, %s119
      %p128 = scmp.eq.s32.totalorder %s22, 1
      %p129 = por %p127, %p128
      %p130 = scmp.ne.s32.totalorder %s119, %s120
      %p131 = scmp.eq.s32.totalorder %s22, 0
      %p132 = por %p130, %p131
      %p133 = scmp.ne.s32.totalorder %s119, %s120
      %p134 = scmp.eq.s32.totalorder %s23, 1
      %p135 = por %p133, %p134
      %p137 = scmp.ne.s32.totalorder %s120, %s136
      %p138 = scmp.eq.s32.totalorder %s23, 0
      %p139 = por %p137, %p138
      %p140 = scmp.le.s32.totalorder 1, %s17
      %p141 = scmp.lt.s32.totalorder %s17, 3
      %p142 = pnand %p140, %p141
      %p143 = pneg %p142
      // Predicated region
      $region9: #{tpu_custom_call.1} parent=5 // pred_check
        _
      $region10: #{tpu_custom_call.1} parent=5 // pred_check_branch
        %145 = sbr.rel (%p142) target = $region12
      $region11: #{tpu_custom_call.1} parent=5 // pred_region
        %s146 = ssub.s32 %s17, 1
        // Predicated region
        $region13: #{tpu_custom_call.1} parent=11 // pred_check
          %p147 = pneg %p64
        $region14: #{tpu_custom_call.1} parent=11 // pred_check_branch
          %149 = sbr.rel (%p147) target = $region16
        $region15: #{tpu_custom_call.1} parent=11 // pred_region
          %s151 = ssub.s32 64, 64
          %152 = vsyncadd [#allocation6], %s151
          %s154 = sshll.u32 [#allocation5], 4
          %s155 = int_to_ptr.vmem [resolvable:$true] %s154
          %157 = dma.hbm_to_vmem [thread:$0]  %s1, 64, %s155, [#allocation6]
        $region16: #{tpu_custom_call.1} parent=11 // pred_fallthru
          _
        // Predicated region
        $region17: #{tpu_custom_call.1} parent=11 // pred_check
          %p158 = pneg %p85
        $region18: #{tpu_custom_call.1} parent=11 // pred_check_branch
          %160 = sbr.rel (%p158) target = $region20
        $region19: #{tpu_custom_call.1} parent=11 // pred_region
          %s162 = ssub.s32 64, 64
          %163 = vsyncadd [#allocation6], %s162
          %s165 = sshll.u32 [#allocation7], 4
          %s166 = int_to_ptr.vmem [resolvable:$true] %s165
          %168 = dma.hbm_to_vmem [thread:$0]  %s2, 64, %s166, [#allocation6]
        $region20: #{tpu_custom_call.1} parent=11 // pred_fallthru
          _
        // Predicated region
        $region21: #{tpu_custom_call.1} parent=11 // pred_check
          %p169 = pneg %p106
        $region22: #{tpu_custom_call.1} parent=11 // pred_check_branch
          %171 = sbr.rel (%p169) target = $region24
        $region23: #{tpu_custom_call.1} parent=11 // pred_region
          _
        $region24: #{tpu_custom_call.1} parent=11 // pred_fallthru
          _
      $region12: #{tpu_custom_call.1} parent=5 // pred_fallthru
        _
      %p172 = scmp.lt.s32.totalorder %s17, 2
      // Predicated region
      $region25: #{tpu_custom_call.1} parent=5 // pred_check
        %p173 = pneg %p172
      $region26: #{tpu_custom_call.1} parent=5 // pred_check_branch
        %175 = sbr.rel (%p173) target = $region28
      $region27: #{tpu_custom_call.1} parent=5 // pred_region
        // Predicated region
        $region29: #{tpu_custom_call.1} parent=27 // pred_check
          %p176 = pneg %p37
        $region30: #{tpu_custom_call.1} parent=27 // pred_check_branch
          %178 = sbr.rel (%p176) target = $region32
        $region31: #{tpu_custom_call.1} parent=27 // pred_region
          %s179 = sand.u32 %s27, 1
          %s180 = scalar_lea.sflag [#allocation3], %s179
          %s181 = sand.u32 %s27, 1
          %s182 = smul.addr %s181, 16
          %s183 = scalar_lea.vmem [#allocation2], %s182
          %s185 = ssub.s32 256, 256
          %186 = vsyncadd %s180, %s185
          %s187 = smul.addr %s17, 2
          %s188 = smul.addr %s187, 128
          %s189 = scalar_lea.hbm %s0, %s188
          %s191 = sshll.u32 %s183, 4
          %s192 = int_to_ptr.vmem [resolvable:$true] %s191
          %194 = dma.hbm_to_vmem [thread:$0]  %s189, 256, %s192, %s180
        $region32: #{tpu_custom_call.1} parent=27 // pred_fallthru
          _
      $region28: #{tpu_custom_call.1} parent=5 // pred_fallthru
        _
      %p195 = scmp.le.s32.totalorder 1, %s17
      %p196 = scmp.lt.s32.totalorder %s17, 3
      %p197 = pnand %p195, %p196
      %p198 = pneg %p197
      // Predicated region
      $region33: #{tpu_custom_call.1} parent=5 // pred_check
        _
      $region34: #{tpu_custom_call.1} parent=5 // pred_check_branch
        %200 = sbr.rel (%p197) target = $region36
      $region35: #{tpu_custom_call.1} parent=5 // pred_region
        %s201 = ssub.s32 %s17, 1
        %s202 = sand.u32 %s30, 1
        %s203 = scalar_lea.sflag [#allocation3], %s202
        %s204 = sand.u32 %s30, 1
        %s205 = smul.addr %s204, 16
        %s206 = scalar_lea.vmem [#allocation2], %s205
        // Predicated region
        $region37: #{tpu_custom_call.1} parent=35 // pred_check
          %p207 = pneg %p43
        $region38: #{tpu_custom_call.1} parent=35 // pred_check_branch
          %209 = sbr.rel (%p207) target = $region40
        $region39: #{tpu_custom_call.1} parent=35 // pred_region
          %210 = dma.done %s203, 256
        $region40: #{tpu_custom_call.1} parent=35 // pred_fallthru
          _
        // Predicated region
        $region41: #{tpu_custom_call.1} parent=35 // pred_check
          %p211 = pneg %p64
        $region42: #{tpu_custom_call.1} parent=35 // pred_check_branch
          %213 = sbr.rel (%p211) target = $region44
        $region43: #{tpu_custom_call.1} parent=35 // pred_region
          %214 = dma.done [#allocation6], 64
        $region44: #{tpu_custom_call.1} parent=35 // pred_fallthru
          _
        // Predicated region
        $region45: #{tpu_custom_call.1} parent=35 // pred_check
          %p215 = pneg %p85
        $region46: #{tpu_custom_call.1} parent=35 // pred_check_branch
          %217 = sbr.rel (%p215) target = $region48
        $region47: #{tpu_custom_call.1} parent=35 // pred_region
          %218 = dma.done [#allocation6], 64
        $region48: #{tpu_custom_call.1} parent=35 // pred_fallthru
          _
        %s219 = sand.u32 %s30, 1
        %s220 = scalar_lea.sflag [#allocation3], %s219
        %s221 = sand.u32 %s30, 1
        %s222 = smul.addr %s221, 16
        %s223 = scalar_lea.vmem [#allocation2], %s222
        %p224 = pneg %p43
        %p225 = pneg %p40
        %p226 = pneg %p64
        %p227 = pneg %p61
        %p228 = pneg %p85
        %p229 = pneg %p82
        %p230 = pneg %p106
        %p231 = pneg %p103
        %p232 = pneg %p132
        %p233 = pneg %p129
        %s234 = sand.u32 %s119, 1
        %s235 = scalar_lea.sflag [#allocation4], %s234
        %s236 = sand.u32 %s119, 1
        %s237 = smul.addr %s236, 16
        %s238 = scalar_lea.vmem [#allocation8], %s237
        %v240 = vld [vmem:[%s206] sm:$0xff]
        %v241 = vld [vmem:[%s206 + $0x8] sm:$0xff]
        %v242 = vlaneseq
        %v243 = vand.u32 %v242, 127
        %v244 = vadd.s32 %v243, 128
        %vm245 = vcmp.lt.s32.totalorder %v243, 0
        %v246 = vsub.s32 0, %v243
        %v247 = vsel %vm245, %v246, %v243
        %v248 = vshrl.u32 %v247, 4
        %v249 = vand.u32 %v247, 15
        %v250 = vsub.s32 0, %v249
        %v251 = vsel %vm245, %v250, %v249
        %vm252 = vcmp.lt.s32.totalorder %v244, 0
        %v253 = vsub.s32 0, %v244
        %v254 = vsel %vm252, %v253, %v244
        %v255 = vshrl.u32 %v254, 4
        %v256 = vand.u32 %v254, 15
        %v257 = vsub.s32 0, %v256
        %v258 = vsel %vm252, %v257, %v256
        %vm259 = vcmp.ne.s32.totalorder %v251, 0
        %vm260 = vcmp.ne.s32.totalorder %v258, 0
        %vm261 = vcmp.lt.s32.totalorder %v251, 0
        %vm262 = vcmp.lt.s32.totalorder %v258, 0
        %vm263 = vmand %vm261, %vm259
        %vm264 = vmand %vm262, %vm260
        %v265 = vadd.s32 %v251, 16
        %v266 = vadd.s32 %v258, 16
        %v267 = vsel %vm263, %v265, %v251
        %v268 = vsel %vm264, %v266, %v258
        %vm269 = vcmp.ge.s32.totalorder %v267, 1
        %vm270 = vcmp.ge.s32.totalorder %v268, 1
        %vm271 = vcmp.le.s32.totalorder %v267, 14
        %vm272 = vcmp.le.s32.totalorder %v268, 14
        %v273 = vld [vmem:[%s3] sm:$0xff]
        %v274 = vsel %vm269, 1, 0
        %v275 = vsel %vm270, 1, 0
        %vm276 = vcmp.eq.s32.totalorder %v274, 1
        %vm277 = vcmp.eq.s32.totalorder %v275, 1
        %281 = vrot.lane.b32.xlu0 0.0, 17
        %v282 = vpop.permute.xlu0 %281
        %283 = vrot.lane.b32.xlu0 %v240, 17
        %v284 = vpop.permute.xlu0 %283
        %285 = vrot.lane.b32.xlu0 %v241, 17
        %v286 = vpop.permute.xlu0 %285
        %vm287 = vcmask 138240
        %v288 = vsel %vm287, %v282, %v284
        %v289 = vsel %vm287, %v284, %v286
        %v292 = vsel %vm276, %v288, 0.0
        %v293 = vsel %vm277, %v289, 0.0
        %v294 = vsel %vm271, 1, 0
        %v295 = vsel %vm272, 1, 0
        %vm296 = vcmp.eq.s32.totalorder %v294, 1
        %vm297 = vcmp.eq.s32.totalorder %v295, 1
        %298 = vrot.lane.b32.xlu0 0.0, 15
        %v299 = vpop.permute.xlu0 %298
        %300 = vrot.lane.b32.xlu0 %v240, 15
        %v301 = vpop.permute.xlu0 %300
        %302 = vrot.lane.b32.xlu0 %v241, 15
        %v303 = vpop.permute.xlu0 %302
        %vm304 = vcmask 121856
        %v305 = vsel %vm304, %v299, %v301
        %v306 = vsel %vm304, %v301, %v303
        %v309 = vsel %vm296, %v305, 0.0
        %v310 = vsel %vm297, %v306, 0.0
        %311 = vrot.lane.b32.xlu0 0.0, 1
        %v312 = vpop.permute.xlu0 %311
        %313 = vrot.lane.b32.xlu0 %v240, 1
        %v314 = vpop.permute.xlu0 %313
        %315 = vrot.lane.b32.xlu0 %v241, 1
        %v316 = vpop.permute.xlu0 %315
        %vm317 = vcmask 7168
        %v318 = vsel %vm317, %v312, %v314
        %v319 = vsel %vm317, %v314, %v316
        %v322 = vsel %vm276, %v318, 0.0
        %v323 = vsel %vm277, %v319, 0.0
        %324 = vrot.lane.b32.xlu0 %v240, 127
        %v325 = vpop.permute.xlu0 %324
        %326 = vrot.lane.b32.xlu0 %v241, 127
        %v327 = vpop.permute.xlu0 %326
        %328 = vrot.lane.b32.xlu0 0.0, 127
        %v329 = vpop.permute.xlu0 %328
        %vm330 = vcmask 1039360
        %v331 = vsel %vm330, %v325, %v327
        %v332 = vsel %vm330, %v327, %v329
        %v335 = vsel %vm296, %v331, 0.0
        %v336 = vsel %vm297, %v332, 0.0
        %337 = vrot.lane.b32.xlu0 %v240, 113
        %v338 = vpop.permute.xlu0 %337
        %339 = vrot.lane.b32.xlu0 %v241, 113
        %v340 = vpop.permute.xlu0 %339
        %341 = vrot.lane.b32.xlu0 0.0, 113
        %v342 = vpop.permute.xlu0 %341
        %vm343 = vcmask 924672
        %v344 = vsel %vm343, %v338, %v340
        %v345 = vsel %vm343, %v340, %v342
        %v348 = vsel %vm276, %v344, 0.0
        %v349 = vsel %vm277, %v345, 0.0
        %350 = vrot.lane.b32.xlu0 %v240, 111
        %v351 = vpop.permute.xlu0 %350
        %352 = vrot.lane.b32.xlu0 %v241, 111
        %v353 = vpop.permute.xlu0 %352
        %354 = vrot.lane.b32.xlu0 0.0, 111
        %v355 = vpop.permute.xlu0 %354
        %vm356 = vcmask 908288
        %v357 = vsel %vm356, %v351, %v353
        %v358 = vsel %vm356, %v353, %v355
        %v361 = vsel %vm296, %v357, 0.0
        %v362 = vsel %vm297, %v358, 0.0
        %363 = vrot.lane.b32.xlu0 0.0, 16
        %v364 = vpop.permute.xlu0 %363
        %365 = vrot.lane.b32.xlu0 %v240, 16
        %v366 = vpop.permute.xlu0 %365
        %367 = vrot.lane.b32.xlu0 %v241, 16
        %v368 = vpop.permute.xlu0 %367
        %vm369 = vcmask 130048
        %v370 = vsel %vm369, %v364, %v366
        %v371 = vsel %vm369, %v366, %v368
        %374 = vrot.lane.b32.xlu0 %v240, 112
        %v375 = vpop.permute.xlu0 %374
        %376 = vrot.lane.b32.xlu0 %v241, 112
        %v377 = vpop.permute.xlu0 %376
        %378 = vrot.lane.b32.xlu0 0.0, 112
        %v379 = vpop.permute.xlu0 %378
        %vm380 = vcmask 916480
        %v381 = vsel %vm380, %v375, %v377
        %v382 = vsel %vm380, %v377, %v379
        %v385 = vpack.c.bf16 %v370, %v292
        %v386 = vpack.c.bf16 %v371, %v293
        %v387 = vpack.c.bf16 %v322, %v309
        %v388 = vpack.c.bf16 %v323, %v310
        %v389 = vpack.c.bf16 %v335, %v240
        %v390 = vpack.c.bf16 %v336, %v241
        %v391 = vpack.c.bf16 %v381, %v348
        %v392 = vpack.c.bf16 %v382, %v349
        %v393 = vpack.c.bf16 %v361, %v361
        %v394 = vpack.c.bf16 %v362, %v362
        %v395 = vld [vmem:[#allocation5] sm:$0xf]
        %vm396 = vcmask 588800
        %v398 = vsel %vm396, %v395, 0
        %vm400 = vcmask 1043456
        %v402 = vsel %vm400, %v393, 0
        %v405 = vsel %vm400, %v394, 0
        %407 = vmatprep.subr.bf16.mxu0 %v386
        %408 = vmatpush1.bf16.msra.mxu0 %v385
        %409 = vmatprep.subr.bf16.mxu0 %v388
        %410 = vmatpush1.bf16.msra.mxu0 %v387
        %411 = vmatprep.subr.bf16.mxu0 %v390
        %412 = vmatpush1.bf16.msra.mxu0 %v389
        %413 = vmatprep.subr.bf16.mxu0 %v392
        %414 = vmatpush1.bf16.msra.mxu0 %v391
        %415 = vmatprep.subr.bf16.mxu0 %v405
        %416 = vmatpush1.bf16.msra.mxu0 %v402
        %417 = vmatprep.subr.bf16.mxu0 0
        %418 = vmatpush1.bf16.msra.mxu0 0
        %419 = vmatprep.subr.bf16.mxu0 0
        %420 = vmatpush1.bf16.msra.mxu0 0
        %421 = vmatprep.subr.bf16.mxu0 0
        %422 = vmatpush1.bf16.msra.mxu0 0
        %423 = vmatprep.subr.bf16.mxu0 0
        %424 = vmatpush1.bf16.msra.mxu0 0
        %425 = vmatprep.subr.bf16.mxu0 0
        %426 = vmatpush1.bf16.msra.mxu0 0
        %427 = vmatprep.subr.bf16.mxu0 0
        %428 = vmatpush1.bf16.msra.mxu0 0
        %429 = vmatprep.subr.bf16.mxu0 0
        %430 = vmatpush1.bf16.msra.mxu0 0
        %431 = vmatprep.subr.bf16.mxu0 0
        %432 = vmatpush1.bf16.msra.mxu0 0
        %433 = vmatprep.subr.bf16.mxu0 0
        %434 = vmatpush1.bf16.msra.mxu0 0
        %435 = vmatprep.subr.bf16.mxu0 0
        %436 = vmatpush1.bf16.msra.mxu0 0
        %437 = vmatprep.subr.bf16.mxu0 0
        %438 = vmatpush1.bf16.msra.mxu0 0
        %439 = vmatprep.mubr.bf16.mxu0 0
        %440 = vmatmul.mubr.bf16.gmra.mrb[0].mxu0 %v398
        %v441 = vpop.f32.mrb[0].mxu0
        %v442 = vadd.f32 0.0, %v441
        %v443 = vpop.f32.mrb[0].mxu0
        %v444 = vadd.f32 0.0, %v443
        %v445 = vpop.f32.mrb[0].mxu0
        %v446 = vpop.f32.mrb[0].mxu0
        %447 = vdwg.mxu0
        %v448 = vmul.f32 %v442, %v442
        %v449 = vmul.f32 %v444, %v444
        %v450 = vadd.f32 %v448, %v449
        %451 = vadd.xlane.f32.xlu0 %v450
        %v452 = vpop.xlane.xlu0 %451
        %v453 = vrcp.pop 256.0
        %v454 = vmul.f32 %v452, %v453
        %v455 = vand.u32 2147483647, %v273
        %v456 = vlaneseq
        %v457 = vshrl.u32 %v456, 7
        %v458 = vsub.s32 0, %v457
        %v459 = vrot.slane %v455, %v458
        %v460 = vadd.f32 %v454, %v459
        %v461 = vrsqrt.pop %v460
        %463 = vset.pattern.permute.xlu0 3
        %464 = vperm.xlu0 %463, %v461
        %v465 = vpop.permute.xlu0 %464
        %v467 = vmul.f32 %v442, %v465
        %v468 = vmul.f32 %v444, %v465
        %470 = vset.pattern.permute.xlu0 0
        %471 = vperm.xlu0 %470, %v273
        %v472 = vpop.permute.xlu0 %471
        %v474 = vmul.f32 %v472, %v467
        %v475 = vmul.f32 %v472, %v468
        %476 = vset.pattern.permute.xlu0 1
        %477 = vperm.xlu0 %476, %v273
        %v478 = vpop.permute.xlu0 %477
        %v480 = vadd.f32 %v474, %v478
        %v481 = vadd.f32 %v475, %v478
        %482 = vset.pattern.permute.xlu0 2
        %483 = vperm.xlu0 %482, %v273
        %v484 = vpop.permute.xlu0 %483
        %v486 = vmax.f32 %v480, %v484
        %v487 = vmax.f32 %v481, %v484
        %v488 = vmax.f32 %v486, 0.0
        %v489 = vmax.f32 %v487, 0.0
        %492 = vrot.lane.b32.xlu0 %v488, 17
        %v493 = vpop.permute.xlu0 %492
        %494 = vrot.lane.b32.xlu0 %v489, 17
        %v495 = vpop.permute.xlu0 %494
        %v496 = vsel %vm287, %v282, %v493
        %v497 = vsel %vm287, %v493, %v495
        %v500 = vsel %vm276, %v496, 0.0
        %v501 = vsel %vm277, %v497, 0.0
        %502 = vrot.lane.b32.xlu0 %v488, 15
        %v503 = vpop.permute.xlu0 %502
        %504 = vrot.lane.b32.xlu0 %v489, 15
        %v505 = vpop.permute.xlu0 %504
        %v506 = vsel %vm304, %v299, %v503
        %v507 = vsel %vm304, %v503, %v505
        %v510 = vsel %vm296, %v506, 0.0
        %v511 = vsel %vm297, %v507, 0.0
        %512 = vrot.lane.b32.xlu0 %v488, 1
        %v513 = vpop.permute.xlu0 %512
        %514 = vrot.lane.b32.xlu0 %v489, 1
        %v515 = vpop.permute.xlu0 %514
        %v516 = vsel %vm317, %v312, %v513
        %v517 = vsel %vm317, %v513, %v515
        %v520 = vsel %vm276, %v516, 0.0
        %v521 = vsel %vm277, %v517, 0.0
        %522 = vrot.lane.b32.xlu0 %v488, 127
        %v523 = vpop.permute.xlu0 %522
        %524 = vrot.lane.b32.xlu0 %v489, 127
        %v525 = vpop.permute.xlu0 %524
        %v526 = vsel %vm330, %v523, %v525
        %v527 = vsel %vm330, %v525, %v329
        %v530 = vsel %vm296, %v526, 0.0
        %v531 = vsel %vm297, %v527, 0.0
        %532 = vrot.lane.b32.xlu0 %v488, 113
        %v533 = vpop.permute.xlu0 %532
        %534 = vrot.lane.b32.xlu0 %v489, 113
        %v535 = vpop.permute.xlu0 %534
        %v536 = vsel %vm343, %v533, %v535
        %v537 = vsel %vm343, %v535, %v342
        %v540 = vsel %vm276, %v536, 0.0
        %v541 = vsel %vm277, %v537, 0.0
        %542 = vrot.lane.b32.xlu0 %v488, 111
        %v543 = vpop.permute.xlu0 %542
        %544 = vrot.lane.b32.xlu0 %v489, 111
        %v545 = vpop.permute.xlu0 %544
        %v546 = vsel %vm356, %v543, %v545
        %v547 = vsel %vm356, %v545, %v355
        %v550 = vsel %vm296, %v546, 0.0
        %v551 = vsel %vm297, %v547, 0.0
        %552 = vrot.lane.b32.xlu0 %v488, 16
        %v553 = vpop.permute.xlu0 %552
        %554 = vrot.lane.b32.xlu0 %v489, 16
        %v555 = vpop.permute.xlu0 %554
        %v556 = vsel %vm369, %v364, %v553
        %v557 = vsel %vm369, %v553, %v555
        %560 = vrot.lane.b32.xlu0 %v488, 112
        %v561 = vpop.permute.xlu0 %560
        %562 = vrot.lane.b32.xlu0 %v489, 112
        %v563 = vpop.permute.xlu0 %562
        %v564 = vsel %vm380, %v561, %v563
        %v565 = vsel %vm380, %v563, %v379
        %v568 = vpack.c.bf16 %v556, %v500
        %v569 = vpack.c.bf16 %v557, %v501
        %v570 = vpack.c.bf16 %v520, %v510
        %v571 = vpack.c.bf16 %v521, %v511
        %v572 = vpack.c.bf16 %v530, %v488
        %v573 = vpack.c.bf16 %v531, %v489
        %v574 = vpack.c.bf16 %v564, %v540
        %v575 = vpack.c.bf16 %v565, %v541
        %v576 = vpack.c.bf16 %v550, %v550
        %v577 = vpack.c.bf16 %v551, %v551
        %v578 = vld [vmem:[#allocation7] sm:$0xf]
        %v580 = vsel %vm396, %v578, 0
        %v583 = vsel %vm400, %v576, 0
        %v586 = vsel %vm400, %v577, 0
        %588 = vmatprep.subr.bf16.mxu0 %v569
        %589 = vmatpush1.bf16.msra.mxu0 %v568
        %590 = vmatprep.subr.bf16.mxu0 %v571
        %591 = vmatpush1.bf16.msra.mxu0 %v570
        %592 = vmatprep.subr.bf16.mxu0 %v573
        %593 = vmatpush1.bf16.msra.mxu0 %v572
        %594 = vmatprep.subr.bf16.mxu0 %v575
        %595 = vmatpush1.bf16.msra.mxu0 %v574
        %596 = vmatprep.subr.bf16.mxu0 %v586
        %597 = vmatpush1.bf16.msra.mxu0 %v583
        %598 = vmatprep.subr.bf16.mxu0 0
        %599 = vmatpush1.bf16.msra.mxu0 0
        %600 = vmatprep.subr.bf16.mxu0 0
        %601 = vmatpush1.bf16.msra.mxu0 0
        %602 = vmatprep.subr.bf16.mxu0 0
        %603 = vmatpush1.bf16.msra.mxu0 0
        %604 = vmatprep.subr.bf16.mxu0 0
        %605 = vmatpush1.bf16.msra.mxu0 0
        %606 = vmatprep.subr.bf16.mxu0 0
        %607 = vmatpush1.bf16.msra.mxu0 0
        %608 = vmatprep.subr.bf16.mxu0 0
        %609 = vmatpush1.bf16.msra.mxu0 0
        %610 = vmatprep.subr.bf16.mxu0 0
        %611 = vmatpush1.bf16.msra.mxu0 0
        %612 = vmatprep.subr.bf16.mxu0 0
        %613 = vmatpush1.bf16.msra.mxu0 0
        %614 = vmatprep.subr.bf16.mxu0 0
        %615 = vmatpush1.bf16.msra.mxu0 0
        %616 = vmatprep.subr.bf16.mxu0 0
        %617 = vmatpush1.bf16.msra.mxu0 0
        %618 = vmatprep.subr.bf16.mxu0 0
        %619 = vmatpush1.bf16.msra.mxu0 0
        %620 = vmatprep.mubr.bf16.mxu0 0
        %621 = vmatmul.mubr.bf16.gmra.mrb[0].mxu0 %v580
        %v622 = vpop.f32.mrb[0].mxu0
        %v623 = vadd.f32 0.0, %v622
        %v624 = vpop.f32.mrb[0].mxu0
        %v625 = vadd.f32 0.0, %v624
        %v626 = vpop.f32.mrb[0].mxu0
        %v627 = vpop.f32.mrb[0].mxu0
        %628 = vdwg.mxu0
        %v629 = vmul.f32 %v623, %v623
        %v630 = vmul.f32 %v625, %v625
        %v631 = vadd.f32 %v629, %v630
        %632 = vadd.xlane.f32.xlu0 %v631
        %v633 = vpop.xlane.xlu0 %632
        %v634 = vmul.f32 %v633, %v453
        %v635 = vadd.f32 %v634, %v459
        %v636 = vrsqrt.pop %v635
        %638 = vset.pattern.permute.xlu0 7
        %639 = vperm.xlu0 %638, %v636
        %v640 = vpop.permute.xlu0 %639
        %v642 = vmul.f32 %v623, %v640
        %v643 = vmul.f32 %v625, %v640
        %644 = vset.pattern.permute.xlu0 4
        %645 = vperm.xlu0 %644, %v273
        %v646 = vpop.permute.xlu0 %645
        %v648 = vmul.f32 %v646, %v642
        %v649 = vmul.f32 %v646, %v643
        %650 = vset.pattern.permute.xlu0 5
        %651 = vperm.xlu0 %650, %v273
        %v652 = vpop.permute.xlu0 %651
        %v654 = vadd.f32 %v648, %v652
        %v655 = vadd.f32 %v649, %v652
        %656 = vset.pattern.permute.xlu0 6
        %657 = vperm.xlu0 %656, %v273
        %v658 = vpop.permute.xlu0 %657
        %v660 = vmax.f32 %v654, %v658
        %v661 = vmax.f32 %v655, %v658
        %v662 = vadd.f32 %v660, %v240
        %v663 = vadd.f32 %v661, %v241
        %v664 = vmax.f32 %v662, 0.0
        %v665 = vmax.f32 %v663, 0.0
        %666 = vst [vmem:[%s238] sm:$0xff] %v664
        %667 = vst [vmem:[%s238 + $0x8] sm:$0xff] %v665
        %s668 = sand.u32 %s119, 1
        %s669 = scalar_lea.sflag [#allocation4], %s668
        %s670 = sand.u32 %s119, 1
        %s671 = smul.addr %s670, 16
        %s672 = scalar_lea.vmem [#allocation8], %s671
        // Predicated region
        $region49: #{tpu_custom_call.1} parent=35 // pred_check
          %p673 = pneg %p129
        $region50: #{tpu_custom_call.1} parent=35 // pred_check_branch
          %675 = sbr.rel (%p673) target = $region52
        $region51: #{tpu_custom_call.1} parent=35 // pred_region
          %s677 = ssub.s32 256, 256
          %678 = vsyncadd %s669, %s677
          %s679 = smul.addr %s22, 2
          %s680 = smul.addr %s679, 128
          %s681 = scalar_lea.hbm %s4, %s680
          %s683 = sshll.u32 %s672, 4
          %s684 = int_to_ptr.vmem [resolvable:$true] %s683
          %686 = dma.vmem_to_hbm [thread:$0]  %s684, 256, %s681, %s669
        $region52: #{tpu_custom_call.1} parent=35 // pred_fallthru
          _
      $region36: #{tpu_custom_call.1} parent=5 // pred_fallthru
        _
      %p687 = scmp.le.s32.totalorder 2, %s17
      // Predicated region
      $region53: #{tpu_custom_call.1} parent=5 // pred_check
        %p688 = pneg %p687
      $region54: #{tpu_custom_call.1} parent=5 // pred_check_branch
        %690 = sbr.rel (%p688) target = $region56
      $region55: #{tpu_custom_call.1} parent=5 // pred_region
        %s691 = ssub.s32 %s17, 2
        // Predicated region
        $region57: #{tpu_custom_call.1} parent=55 // pred_check
          %p692 = pneg %p135
        $region58: #{tpu_custom_call.1} parent=55 // pred_check_branch
          %694 = sbr.rel (%p692) target = $region60
        $region59: #{tpu_custom_call.1} parent=55 // pred_region
          %s695 = sand.u32 %s120, 1
          %s696 = scalar_lea.sflag [#allocation4], %s695
          %s697 = sand.u32 %s120, 1
          %s698 = smul.addr %s697, 16
          %s699 = scalar_lea.vmem [#allocation8], %s698
          %700 = dma.done %s696, 256
        $region60: #{tpu_custom_call.1} parent=55 // pred_fallthru
          _
      $region56: #{tpu_custom_call.1} parent=5 // pred_fallthru
        _
    $region6: #{tpu_custom_call.1} parent=1 // loop_footer
      %s21 = sadd.s32 1, %s17
    $region7: #{tpu_custom_call.1} parent=1 // loop_footer_branch
      %16 = sbr.rel target = $region3
    $region8: #{tpu_custom_call.1} parent=1 // loop_exit
      _
    %701 = vsyncpa [#allocation3], 1
    %s702 = scalar_lea.sflag [#allocation3], 1
    %703 = vsyncpa %s702, 1
    %704 = vsyncpa [#allocation6], 1
    %705 = vsyncpa [#allocation4], 1
    %s706 = scalar_lea.sflag [#allocation4], 1
    %707 = vsyncpa %s706, 1

</llo_original>
